<compile_context>
chip_gen: v5e
topology: v5e:2x2
jax: 0.10.0
libtpu: 0.0.40
codegen_flags: <defaults>
</compile_context>

<pallas_src>
import jax
import jax.numpy as jnp
from jax.experimental import pallas as pl
from jax.experimental.pallas import tpu as pltpu


def qnetwork_kernel(x_ref,
                    w1_ref, b1_ref,
                    w2_ref, b2_ref,
                    w3_ref, b3_ref,
                    w4_ref, b4_ref,
                    o_ref):
    # fc1 -> (dropout: identity) -> relu    (bf16 MXU operands, f32 accumulate)
    h = jnp.dot(x_ref[...], w1_ref[...],
                preferred_element_type=jnp.float32) + b1_ref[...]
    h = jnp.maximum(h, 0.0)                       # element-wise stays f32 (v5e)

    # fc2 -> (dropout: identity) -> relu
    h = jnp.dot(h.astype(jnp.bfloat16), w2_ref[...],
                preferred_element_type=jnp.float32) + b2_ref[...]
    h = jnp.maximum(h, 0.0)

    # fc3 -> (dropout: identity) -> relu
    h = jnp.dot(h.astype(jnp.bfloat16), w3_ref[...],
                preferred_element_type=jnp.float32) + b3_ref[...]
    h = jnp.maximum(h, 0.0)

    # fc4 (no activation); output dim is lane-padded to a multiple of 128
    out = jnp.dot(h.astype(jnp.bfloat16), w4_ref[...],
                  preferred_element_type=jnp.float32) + b4_ref[...]
    o_ref[...] = out.astype(o_ref.dtype)


def _round_up(x, m):
    return ((x + m - 1) // m) * m


def _choose_tile_b(batch):
    """Pick a batch tile: ~512 rows, multiple of 8, >=2 grid steps when possible."""
    padded8 = _round_up(batch, 8)
    if padded8 <= 256:
        return padded8, padded8                        # tiny batch: one tile
    # keep at least 2 grid steps so both v7x TensorCores get work
    tile = min(512, _round_up(padded8 // 2, 8))
    padded = _round_up(padded8, tile)
    return tile, padded


def qnetwork_forward(state, params, *, tile_b=None):
    """state: (B, state_size) float32.  params: dict of transposed f32 weights/biases."""
    B, state_size = state.shape
    w1, b1 = params["w1"], params["b1"]
    w2, b2 = params["w2"], params["b2"]
    w3, b3 = params["w3"], params["b3"]
    w4, b4 = params["w4"], params["b4"]
    f1, f2, f3 = w1.shape[1], w2.shape[1], w3.shape[1]
    action_size = w4.shape[1]

    # ---- batch tiling (pad B instead of asserting divisibility) -------------
    if tile_b is None:
        tile_b, padded_b = _choose_tile_b(B)
    else:
        tile_b = _round_up(min(tile_b, _round_up(B, 8)), 8)
        padded_b = _round_up(B, tile_b)
    grid = (padded_b // tile_b,)

    # ---- lane-dense fc4 output: pad action dim to a multiple of 128 ---------
    n_pad = _round_up(action_size, 128)

    # ---- one-time casts / padding in the wrapper (not per grid step) --------
    x = state.astype(jnp.bfloat16)
    if padded_b != B:
        x = jnp.pad(x, ((0, padded_b - B), (0, 0)))
    w1b, w2b, w3b = (w.astype(jnp.bfloat16) for w in (w1, w2, w3))
    w4b = jnp.pad(w4.astype(jnp.bfloat16), ((0, 0), (0, n_pad - action_size)))
    b4p = jnp.pad(b4, ((0, 0), (0, n_pad - action_size)))

    full = lambda shape: pl.BlockSpec(shape, lambda i: (0, 0))

    flops = 2 * padded_b * (state_size * f1 + f1 * f2 + f2 * f3 + f3 * n_pad)
    bytes_accessed = (
        2 * (state_size * f1 + f1 * f2 + f2 * f3 + f3 * n_pad)   # bf16 weights
        + 4 * (f1 + f2 + f3 + n_pad)                             # f32 biases
        + 2 * padded_b * state_size                              # bf16 input
        + 4 * padded_b * n_pad)                                  # f32 output

    out_padded = pl.pallas_call(
        qnetwork_kernel,
        out_shape=jax.ShapeDtypeStruct((padded_b, n_pad), jnp.float32),
        grid_spec=pltpu.PrefetchScalarGridSpec(
            num_scalar_prefetch=0,
            grid=grid,
            in_specs=[
                pl.BlockSpec((tile_b, state_size), lambda i: (i, 0)),  # x
                full((state_size, f1)), full((1, f1)),                 # fc1
                full((f1, f2)), full((1, f2)),                         # fc2
                full((f2, f3)), full((1, f3)),                         # fc3
                full((f3, n_pad)), full((1, n_pad)),                   # fc4 (padded)
            ],
            out_specs=pl.BlockSpec((tile_b, n_pad), lambda i: (i, 0)),
        ),
        compiler_params=pltpu.CompilerParams(
            dimension_semantics=("parallel",)),
        cost_estimate=pl.CostEstimate(
            flops=flops, transcendentals=0, bytes_accessed=bytes_accessed),
    )(x, w1b, b1, w2b, b2, w3b, b3, w4b, b4p)

    return out_padded[:B, :action_size]


def init_params(key, state_size, action_size, fc1=128, fc2=128, fc3=128):
    """Deterministic init mimicking nn.Linear's uniform(-1/sqrt(fan_in), 1/sqrt(fan_in)).
    Weights are stored transposed: (in_features, out_features), float32."""
    dims = [(state_size, fc1), (fc1, fc2), (fc2, fc3), (fc3, action_size)]
    params = {}
    for idx, (fan_in, fan_out) in enumerate(dims, start=1):
        key, kw, kb = jax.random.split(key, 3)
        bound = 1.0 / (fan_in ** 0.5)
        params[f"w{idx}"] = jax.random.uniform(
            kw, (fan_in, fan_out), jnp.float32, minval=-bound, maxval=bound)
        params[f"b{idx}"] = jax.random.uniform(
            kb, (1, fan_out), jnp.float32, minval=-bound, maxval=bound)
    return params


def qnetwork_ref(state, params):
    """Pure-JAX reference mirroring the kernel's bf16-operand / f32-accumulate math
    (dropout = identity in eval mode)."""
    def lin(x, w, b):
        return jnp.dot(x.astype(jnp.bfloat16), w.astype(jnp.bfloat16),
                       preferred_element_type=jnp.float32) + b
    h = jnp.maximum(lin(state, params["w1"], params["b1"]), 0.0)
    h = jnp.maximum(lin(h, params["w2"], params["b2"]), 0.0)
    h = jnp.maximum(lin(h, params["w3"], params["b3"]), 0.0)
    return lin(h, params["w4"], params["b4"])


if __name__ == "__main__":
    key = jax.random.PRNGKey(0)
    batch, state_size, action_size = 8, 16, 4

    k_state, k_params = jax.random.split(key)
    state = jax.random.normal(k_state, (batch, state_size), dtype=jnp.float32)
    params = init_params(k_params, state_size, action_size)

    out = qnetwork_forward(state, params)
    out = jax.block_until_ready(out)

    ref = qnetwork_ref(state, params)
    assert out.shape == (batch, action_size)
    assert jnp.allclose(out, ref, atol=1e-3, rtol=1e-3), "mismatch vs reference"

    # also exercise a non-multiple, larger batch path (padding + >1 grid step)
    state2 = jax.random.normal(key, (300, state_size), dtype=jnp.float32)
    out2 = jax.block_until_ready(qnetwork_forward(state2, params))
    assert out2.shape == (300, action_size)
    assert jnp.allclose(out2, qnetwork_ref(state2, params), atol=1e-3, rtol=1e-3)

    print("KERNEL_OK")
</pallas_src>

<mosaic_0001>
module attributes {stable_mosaic.version = 11 : i64} {
  func.func @qnetwork_kernel(%arg0: i32, %arg1: memref<8x16xbf16, #tpu.memory_space<vmem>>, %arg2: memref<16x128xbf16, #tpu.memory_space<vmem>>, %arg3: memref<1x128xf32, #tpu.memory_space<vmem>>, %arg4: memref<128x128xbf16, #tpu.memory_space<vmem>>, %arg5: memref<1x128xf32, #tpu.memory_space<vmem>>, %arg6: memref<128x128xbf16, #tpu.memory_space<vmem>>, %arg7: memref<1x128xf32, #tpu.memory_space<vmem>>, %arg8: memref<128x128xbf16, #tpu.memory_space<vmem>>, %arg9: memref<1x128xf32, #tpu.memory_space<vmem>>, %arg10: memref<8x128xf32, #tpu.memory_space<vmem>>) attributes {dimension_semantics = [#tpu.dimension_semantics<parallel>], iteration_bounds = array<i64: 1>, scalar_prefetch = 0 : i64, scratch_operands = 0 : i64, tpu.core_type = #tpu.core_type<tc>, window_params = [{transform_indices = @transform_0, window_bounds = array<i64: 8, 16>}, {pipeline_mode = #tpu.pipeline_mode<synchronous>, transform_indices = @transform_1, window_bounds = array<i64: 16, 128>}, {pipeline_mode = #tpu.pipeline_mode<synchronous>, transform_indices = @transform_2, window_bounds = array<i64: 1, 128>}, {pipeline_mode = #tpu.pipeline_mode<synchronous>, transform_indices = @transform_3, window_bounds = array<i64: 128, 128>}, {pipeline_mode = #tpu.pipeline_mode<synchronous>, transform_indices = @transform_4, window_bounds = array<i64: 1, 128>}, {pipeline_mode = #tpu.pipeline_mode<synchronous>, transform_indices = @transform_5, window_bounds = array<i64: 128, 128>}, {pipeline_mode = #tpu.pipeline_mode<synchronous>, transform_indices = @transform_6, window_bounds = array<i64: 1, 128>}, {pipeline_mode = #tpu.pipeline_mode<synchronous>, transform_indices = @transform_7, window_bounds = array<i64: 128, 128>}, {pipeline_mode = #tpu.pipeline_mode<synchronous>, transform_indices = @transform_8, window_bounds = array<i64: 1, 128>}, {transform_indices = @transform_9, window_bounds = array<i64: 8, 128>}]} {
    %c0 = arith.constant 0 : index
    %c0_0 = arith.constant 0 : index
    %0 = vector.load %arg1[%c0, %c0_0] : memref<8x16xbf16, #tpu.memory_space<vmem>>, vector<8x16xbf16>
    %c0_1 = arith.constant 0 : index
    %c0_2 = arith.constant 0 : index
    %1 = vector.load %arg2[%c0_1, %c0_2] : memref<16x128xbf16, #tpu.memory_space<vmem>>, vector<16x128xbf16>
    %cst = arith.constant dense<0.000000e+00> : vector<8x128xf32>
    %2 = tpu.matmul %0, %1, %cst {dimension_numbers = #tpu.dot_dimension_numbers<[1], [0], [0], [1], [0, 0, 1, 1], [], []>} : vector<8x16xbf16>, vector<16x128xbf16>, vector<8x128xf32> -> vector<8x128xf32>
    %c0_3 = arith.constant 0 : index
    %c0_4 = arith.constant 0 : index
    %3 = vector.load %arg3[%c0_3, %c0_4] : memref<1x128xf32, #tpu.memory_space<vmem>>, vector<1x128xf32>
    %4 = vector.broadcast %3 : vector<1x128xf32> to vector<8x128xf32>
    %5 = arith.addf %2, %4 : vector<8x128xf32>
    %cst_5 = arith.constant 0.000000e+00 : f32
    %6 = vector.broadcast %cst_5 : f32 to vector<8x128xf32>
    %7 = arith.maximumf %5, %6 : vector<8x128xf32>
    %8 = arith.truncf %7 : vector<8x128xf32> to vector<8x128xbf16>
    %c0_6 = arith.constant 0 : index
    %c0_7 = arith.constant 0 : index
    %9 = vector.load %arg4[%c0_6, %c0_7] : memref<128x128xbf16, #tpu.memory_space<vmem>>, vector<128x128xbf16>
    %cst_8 = arith.constant dense<0.000000e+00> : vector<8x128xf32>
    %10 = tpu.matmul %8, %9, %cst_8 {dimension_numbers = #tpu.dot_dimension_numbers<[1], [0], [0], [1], [0, 0, 1, 1], [], []>} : vector<8x128xbf16>, vector<128x128xbf16>, vector<8x128xf32> -> vector<8x128xf32>
    %c0_9 = arith.constant 0 : index
    %c0_10 = arith.constant 0 : index
    %11 = vector.load %arg5[%c0_9, %c0_10] : memref<1x128xf32, #tpu.memory_space<vmem>>, vector<1x128xf32>
    %12 = vector.broadcast %11 : vector<1x128xf32> to vector<8x128xf32>
    %13 = arith.addf %10, %12 : vector<8x128xf32>
    %cst_11 = arith.constant 0.000000e+00 : f32
    %14 = vector.broadcast %cst_11 : f32 to vector<8x128xf32>
    %15 = arith.maximumf %13, %14 : vector<8x128xf32>
    %16 = arith.truncf %15 : vector<8x128xf32> to vector<8x128xbf16>
    %c0_12 = arith.constant 0 : index
    %c0_13 = arith.constant 0 : index
    %17 = vector.load %arg6[%c0_12, %c0_13] : memref<128x128xbf16, #tpu.memory_space<vmem>>, vector<128x128xbf16>
    %cst_14 = arith.constant dense<0.000000e+00> : vector<8x128xf32>
    %18 = tpu.matmul %16, %17, %cst_14 {dimension_numbers = #tpu.dot_dimension_numbers<[1], [0], [0], [1], [0, 0, 1, 1], [], []>} : vector<8x128xbf16>, vector<128x128xbf16>, vector<8x128xf32> -> vector<8x128xf32>
    %c0_15 = arith.constant 0 : index
    %c0_16 = arith.constant 0 : index
    %19 = vector.load %arg7[%c0_15, %c0_16] : memref<1x128xf32, #tpu.memory_space<vmem>>, vector<1x128xf32>
    %20 = vector.broadcast %19 : vector<1x128xf32> to vector<8x128xf32>
    %21 = arith.addf %18, %20 : vector<8x128xf32>
    %cst_17 = arith.constant 0.000000e+00 : f32
    %22 = vector.broadcast %cst_17 : f32 to vector<8x128xf32>
    %23 = arith.maximumf %21, %22 : vector<8x128xf32>
    %24 = arith.truncf %23 : vector<8x128xf32> to vector<8x128xbf16>
    %c0_18 = arith.constant 0 : index
    %c0_19 = arith.constant 0 : index
    %25 = vector.load %arg8[%c0_18, %c0_19] : memref<128x128xbf16, #tpu.memory_space<vmem>>, vector<128x128xbf16>
    %cst_20 = arith.constant dense<0.000000e+00> : vector<8x128xf32>
    %26 = tpu.matmul %24, %25, %cst_20 {dimension_numbers = #tpu.dot_dimension_numbers<[1], [0], [0], [1], [0, 0, 1, 1], [], []>} : vector<8x128xbf16>, vector<128x128xbf16>, vector<8x128xf32> -> vector<8x128xf32>
    %c0_21 = arith.constant 0 : index
    %c0_22 = arith.constant 0 : index
    %27 = vector.load %arg9[%c0_21, %c0_22] : memref<1x128xf32, #tpu.memory_space<vmem>>, vector<1x128xf32>
    %28 = vector.broadcast %27 : vector<1x128xf32> to vector<8x128xf32>
    %29 = arith.addf %26, %28 : vector<8x128xf32>
    %c0_23 = arith.constant 0 : index
    %c0_24 = arith.constant 0 : index
    %30 = vector.load %arg10[%c0_23, %c0_24] : memref<8x128xf32, #tpu.memory_space<vmem>>, vector<8x128xf32>
    tpu.vector_store %arg10[%c0_23, %c0_24], %29 {strides = array<i32>} : memref<8x128xf32, #tpu.memory_space<vmem>>, vector<8x128xf32>,
    return
  }
  func.func @transform_0(%arg0: i32) -> (i32, i32) {
    %c0_i32 = arith.constant 0 : i32
    %c0_i32_0 = arith.constant 0 : i32
    return %arg0, %c0_i32 : i32, i32
  }
  func.func @transform_1(%arg0: i32) -> (i32, i32) {
    %c0_i32 = arith.constant 0 : i32
    %c0_i32_0 = arith.constant 0 : i32
    %c0_i32_1 = arith.constant 0 : i32
    return %c0_i32, %c0_i32_0 : i32, i32
  }
  func.func @transform_2(%arg0: i32) -> (i32, i32) {
    %c0_i32 = arith.constant 0 : i32
    %c0_i32_0 = arith.constant 0 : i32
    %c0_i32_1 = arith.constant 0 : i32
    return %c0_i32, %c0_i32_0 : i32, i32
  }
  func.func @transform_3(%arg0: i32) -> (i32, i32) {
    %c0_i32 = arith.constant 0 : i32
    %c0_i32_0 = arith.constant 0 : i32
    %c0_i32_1 = arith.constant 0 : i32
    return %c0_i32, %c0_i32_0 : i32, i32
  }
  func.func @transform_4(%arg0: i32) -> (i32, i32) {
    %c0_i32 = arith.constant 0 : i32
    %c0_i32_0 = arith.constant 0 : i32
    %c0_i32_1 = arith.constant 0 : i32
    return %c0_i32, %c0_i32_0 : i32, i32
  }
  func.func @transform_5(%arg0: i32) -> (i32, i32) {
    %c0_i32 = arith.constant 0 : i32
    %c0_i32_0 = arith.constant 0 : i32
    %c0_i32_1 = arith.constant 0 : i32
    return %c0_i32, %c0_i32_0 : i32, i32
  }
  func.func @transform_6(%arg0: i32) -> (i32, i32) {
    %c0_i32 = arith.constant 0 : i32
    %c0_i32_0 = arith.constant 0 : i32
    %c0_i32_1 = arith.constant 0 : i32
    return %c0_i32, %c0_i32_0 : i32, i32
  }
  func.func @transform_7(%arg0: i32) -> (i32, i32) {
    %c0_i32 = arith.constant 0 : i32
    %c0_i32_0 = arith.constant 0 : i32
    %c0_i32_1 = arith.constant 0 : i32
    return %c0_i32, %c0_i32_0 : i32, i32
  }
  func.func @transform_8(%arg0: i32) -> (i32, i32) {
    %c0_i32 = arith.constant 0 : i32
    %c0_i32_0 = arith.constant 0 : i32
    %c0_i32_1 = arith.constant 0 : i32
    return %c0_i32, %c0_i32_0 : i32, i32
  }
  func.func @transform_9(%arg0: i32) -> (i32, i32) {
    %c0_i32 = arith.constant 0 : i32
    %c0_i32_0 = arith.constant 0 : i32
    return %arg0, %c0_i32 : i32, i32
  }
}

</mosaic_0001>

<llo_original>
// kernel: tpu_custom_call.1
$region0: #{tpu_custom_call.1}
  #allocation0 [shape = 'u32[]', space=smem, size = 0x4, offset = 0x4, fixed_abs, tag = 'smem constant byte address 0x4 - core index']
  #allocation1 [shape = 'u32[72,128]{1,0:T(1,128)}', space=vmem, size = 0x9000, scoped, tag = 'internal scratch']
  %s0 = inlined_call_operand.hbm [shape: bf16[8,16], index: 0, kind: input, shape index: {}]
  %s1 = inlined_call_operand.hbm [shape: bf16[16,128], index: 1, kind: input, shape index: {}]
  %s2 = inlined_call_operand.vmem [shape: f32[1,128], index: 2, kind: input, shape index: {}]
  %s3 = inlined_call_operand.hbm [shape: bf16[128,128], index: 3, kind: input, shape index: {}]
  %s4 = inlined_call_operand.vmem [shape: f32[1,128], index: 4, kind: input, shape index: {}]
  %s5 = inlined_call_operand.hbm [shape: bf16[128,128], index: 5, kind: input, shape index: {}]
  %s6 = inlined_call_operand.vmem [shape: f32[1,128], index: 6, kind: input, shape index: {}]
  %s7 = inlined_call_operand.hbm [shape: bf16[128,128], index: 7, kind: input, shape index: {}]
  %s8 = inlined_call_operand.vmem [shape: f32[1,128], index: 8, kind: input, shape index: {}]
  %s9 = inlined_call_operand.hbm [shape: f32[8,128], index: 9, kind: output, shape index: {}]
  %s10 = sld [smem:[#allocation0]]
  $region66: #{tpu_custom_call.1} parent=0
    _
  %s12 = ssub.s32 1, %s10
  %s13 = scalar_select 0, %s12, %s10
  $region1: #{tpu_custom_call.1} parent=0
    #allocation2 [shape = 'u8[2048]{0}', space=vmem, size = 0x800, scoped, tag = 'input window, operand 0, single buffered']
    #allocation3 [shape = 's32[1]{0}', space=sflag, size = 0x4, scoped, tag = 'scoped memory for tpu_custom_call.1']
    #allocation4 [shape = 's32[1]{0}', space=sflag, size = 0x4, scoped, tag = 'scoped memory for tpu_custom_call.1']
    #allocation5 [shape = 'u8[4096]{0}', space=vmem, size = 0x1000, scoped, tag = 'input window, operand 1, single buffered']
    #allocation6 [shape = 's32[1]{0}', space=sflag, size = 0x4, scoped, tag = 'scoped memory for tpu_custom_call.1']
    #allocation7 [shape = 'u8[32768]{0}', space=vmem, size = 0x8000, scoped, tag = 'input window, operand 3, single buffered']
    #allocation8 [shape = 'u8[32768]{0}', space=vmem, size = 0x8000, scoped, tag = 'input window, operand 5, single buffered']
    #allocation9 [shape = 's32[1]{0}', space=sflag, size = 0x4, scoped, tag = 'scoped memory for tpu_custom_call.1']
    #allocation10 [shape = 'u8[32768]{0}', space=vmem, size = 0x8000, scoped, tag = 'input window, operand 7, single buffered']
    #allocation11 [shape = 'u8[4096]{0}', space=vmem, size = 0x1000, scoped, tag = 'output window, operand 0, single buffered']
    %14 = vsyncpa [#allocation3], 0
    %15 = vsyncpa [#allocation6], 0
    %16 = vsyncpa [#allocation9], 0
    %17 = vsyncpa [#allocation4], 0
    // Predicated region
    $region2: #{tpu_custom_call.1} parent=1 // pred_check
      _
    $region3: #{tpu_custom_call.1} parent=1 // pred_check_branch
      %19 = sbr.rel (0) target = $region5
    $region4: #{tpu_custom_call.1} parent=1 // pred_region
      %21 = vsyncadd [#allocation3], 0
      %s23 = sshll.u32 %s0, 4
      %s24 = int_to_ptr.hbm [resolvable:$true] %s23
      %s25 = sshll.u32 [#allocation2], 4
      %s26 = int_to_ptr.vmem [resolvable:$true] %s25
      %28 = dma.hbm_to_vmem [thread:$0]  %s24, 64, %s26, [#allocation3]
    $region5: #{tpu_custom_call.1} parent=1 // pred_fallthru
      _
    // Predicated region
    $region6: #{tpu_custom_call.1} parent=1 // pred_check
      _
    $region7: #{tpu_custom_call.1} parent=1 // pred_check_branch
      %30 = sbr.rel (0) target = $region9
    $region8: #{tpu_custom_call.1} parent=1 // pred_region
      %32 = vsyncadd [#allocation6], 0
      %s33 = sshll.u32 %s1, 4
      %s34 = int_to_ptr.hbm [resolvable:$true] %s33
      %s35 = sshll.u32 [#allocation5], 4
      %s36 = int_to_ptr.vmem [resolvable:$true] %s35
      %41 = dma.hbm_to_vmem [thread:$0]  %s34, 128, %s36, [#allocation6], 64, 64, 4
    $region9: #{tpu_custom_call.1} parent=1 // pred_fallthru
      _
    // Predicated region
    $region10: #{tpu_custom_call.1} parent=1 // pred_check
      _
    $region11: #{tpu_custom_call.1} parent=1 // pred_check_branch
      %43 = sbr.rel (0) target = $region13
    $region12: #{tpu_custom_call.1} parent=1 // pred_region
      _
    $region13: #{tpu_custom_call.1} parent=1 // pred_fallthru
      _
    // Predicated region
    $region14: #{tpu_custom_call.1} parent=1 // pred_check
      _
    $region15: #{tpu_custom_call.1} parent=1 // pred_check_branch
      %45 = sbr.rel (0) target = $region17
    $region16: #{tpu_custom_call.1} parent=1 // pred_region
      %47 = vsyncadd [#allocation6], 0
      %s48 = sshll.u32 %s3, 4
      %s49 = int_to_ptr.hbm [resolvable:$true] %s48
      %s50 = sshll.u32 [#allocation7], 4
      %s51 = int_to_ptr.vmem [resolvable:$true] %s50
      %56 = dma.hbm_to_vmem [thread:$0]  %s49, 1024, %s51, [#allocation6], 64, 64, 4
    $region17: #{tpu_custom_call.1} parent=1 // pred_fallthru
      _
    // Predicated region
    $region18: #{tpu_custom_call.1} parent=1 // pred_check
      _
    $region19: #{tpu_custom_call.1} parent=1 // pred_check_branch
      %58 = sbr.rel (0) target = $region21
    $region20: #{tpu_custom_call.1} parent=1 // pred_region
      _
    $region21: #{tpu_custom_call.1} parent=1 // pred_fallthru
      _
    // Predicated region
    $region22: #{tpu_custom_call.1} parent=1 // pred_check
      _
    $region23: #{tpu_custom_call.1} parent=1 // pred_check_branch
      %60 = sbr.rel (0) target = $region25
    $region24: #{tpu_custom_call.1} parent=1 // pred_region
      %62 = vsyncadd [#allocation9], 0
      %s63 = sshll.u32 %s5, 4
      %s64 = int_to_ptr.hbm [resolvable:$true] %s63
      %s65 = sshll.u32 [#allocation8], 4
      %s66 = int_to_ptr.vmem [resolvable:$true] %s65
      %71 = dma.hbm_to_vmem [thread:$0]  %s64, 1024, %s66, [#allocation9], 64, 64, 4
    $region25: #{tpu_custom_call.1} parent=1 // pred_fallthru
      _
    // Predicated region
    $region26: #{tpu_custom_call.1} parent=1 // pred_check
      _
    $region27: #{tpu_custom_call.1} parent=1 // pred_check_branch
      %73 = sbr.rel (0) target = $region29
    $region28: #{tpu_custom_call.1} parent=1 // pred_region
      _
    $region29: #{tpu_custom_call.1} parent=1 // pred_fallthru
      _
    // Predicated region
    $region30: #{tpu_custom_call.1} parent=1 // pred_check
      _
    $region31: #{tpu_custom_call.1} parent=1 // pred_check_branch
      %75 = sbr.rel (0) target = $region33
    $region32: #{tpu_custom_call.1} parent=1 // pred_region
      %77 = vsyncadd [#allocation9], 0
      %s78 = sshll.u32 %s7, 4
      %s79 = int_to_ptr.hbm [resolvable:$true] %s78
      %s80 = sshll.u32 [#allocation10], 4
      %s81 = int_to_ptr.vmem [resolvable:$true] %s80
      %86 = dma.hbm_to_vmem [thread:$0]  %s79, 1024, %s81, [#allocation9], 64, 64, 4
    $region33: #{tpu_custom_call.1} parent=1 // pred_fallthru
      _
    // Predicated region
    $region34: #{tpu_custom_call.1} parent=1 // pred_check
      _
    $region35: #{tpu_custom_call.1} parent=1 // pred_check_branch
      %88 = sbr.rel (0) target = $region37
    $region36: #{tpu_custom_call.1} parent=1 // pred_region
      _
    $region37: #{tpu_custom_call.1} parent=1 // pred_fallthru
      _
    // Predicated region
    $region38: #{tpu_custom_call.1} parent=1 // pred_check
      _
    $region39: #{tpu_custom_call.1} parent=1 // pred_check_branch
      %90 = sbr.rel (0) target = $region41
    $region40: #{tpu_custom_call.1} parent=1 // pred_region
      %92 = dma.done [#allocation3], 64
    $region41: #{tpu_custom_call.1} parent=1 // pred_fallthru
      _
    // Predicated region
    $region42: #{tpu_custom_call.1} parent=1 // pred_check
      _
    $region43: #{tpu_custom_call.1} parent=1 // pred_check_branch
      %94 = sbr.rel (0) target = $region45
    $region44: #{tpu_custom_call.1} parent=1 // pred_region
      %96 = dma.done [#allocation6], 128
    $region45: #{tpu_custom_call.1} parent=1 // pred_fallthru
      _
    // Predicated region
    $region46: #{tpu_custom_call.1} parent=1 // pred_check
      _
    $region47: #{tpu_custom_call.1} parent=1 // pred_check_branch
      %98 = sbr.rel (0) target = $region49
    $region48: #{tpu_custom_call.1} parent=1 // pred_region
      %100 = dma.done [#allocation6], 1024
    $region49: #{tpu_custom_call.1} parent=1 // pred_fallthru
      _
    // Predicated region
    $region50: #{tpu_custom_call.1} parent=1 // pred_check
      _
    $region51: #{tpu_custom_call.1} parent=1 // pred_check_branch
      %102 = sbr.rel (0) target = $region53
    $region52: #{tpu_custom_call.1} parent=1 // pred_region
      %104 = dma.done [#allocation9], 1024
    $region53: #{tpu_custom_call.1} parent=1 // pred_fallthru
      _
    // Predicated region
    $region54: #{tpu_custom_call.1} parent=1 // pred_check
      _
    $region55: #{tpu_custom_call.1} parent=1 // pred_check_branch
      %106 = sbr.rel (0) target = $region57
    $region56: #{tpu_custom_call.1} parent=1 // pred_region
      %108 = dma.done [#allocation9], 1024
    $region57: #{tpu_custom_call.1} parent=1 // pred_fallthru
      _
    %v110 = vld [vmem:[#allocation2] sm:$0xf]
    %v111 = vld [vmem:[#allocation5] sm:$0xf]
    %v112 = vld [vmem:[#allocation5 + $0x4] sm:$0xf]
    %v113 = vld [vmem:[%s2] sm:$0x1]
    %v115 = vperm.slane %v113, 0
    %v119 = vunpack.c.l.b16 %v111
    %v120 = vunpack.c.l.b16 %v112
    %v121 = vpack.c.b16 %v120, %v119
    %vm123 = vcmask 130048
    %v125 = vsel %vm123, %v110, 0
    %127 = vmatpush.bf16.msra.mxu0 0
    %128 = vmatpush.bf16.msra.mxu0 0
    %129 = vmatpush.bf16.msra.mxu0 0
    %130 = vmatpush.bf16.msra.mxu0 0
    %131 = vmatpush.bf16.msra.mxu0 0
    %132 = vmatpush.bf16.msra.mxu0 0
    %133 = vmatpush.bf16.msra.mxu0 0
    %134 = vmatpush.bf16.msra.mxu0 %v121
    %135 = vmatmul.bf16.gmra.mxu0 %v125
    %v136 = vpop.f32.mrf.mxu0
    %v137 = vadd.f32 %v115, %v136
    %v138 = vpop.f32.mrf.mxu0
    %139 = vdwg.mxu0
    %v140 = vmax.f32 %v137, 0.0
    %v141 = vpack.c.bf16 %v140, %v140
    %v142 = vld [vmem:[#allocation7] sm:$0xf]
    %v143 = vld [vmem:[#allocation7 + $0x4] sm:$0xf]
    %v144 = vld [vmem:[#allocation7 + $0x8] sm:$0xf]
    %v145 = vld [vmem:[#allocation7 + $0xc] sm:$0xf]
    %v146 = vld [vmem:[#allocation7 + $0x10] sm:$0xf]
    %v147 = vld [vmem:[#allocation7 + $0x14] sm:$0xf]
    %v148 = vld [vmem:[#allocation7 + $0x18] sm:$0xf]
    %v149 = vld [vmem:[#allocation7 + $0x1c] sm:$0xf]
    %v150 = vld [vmem:[#allocation7 + $0x20] sm:$0xf]
    %v151 = vld [vmem:[#allocation7 + $0x24] sm:$0xf]
    %v152 = vld [vmem:[#allocation7 + $0x28] sm:$0xf]
    %v153 = vld [vmem:[#allocation7 + $0x2c] sm:$0xf]
    %v154 = vld [vmem:[#allocation7 + $0x30] sm:$0xf]
    %v155 = vld [vmem:[#allocation7 + $0x34] sm:$0xf]
    %v156 = vld [vmem:[#allocation7 + $0x38] sm:$0xf]
    %v157 = vld [vmem:[#allocation7 + $0x3c] sm:$0xf]
    %v158 = vld [vmem:[%s4] sm:$0x1]
    %v160 = vperm.slane %v158, 0
    %v178 = vunpack.c.l.b16 %v142
    %v179 = vunpack.c.l.b16 %v143
    %v180 = vunpack.c.l.b16 %v144
    %v181 = vunpack.c.l.b16 %v145
    %v182 = vunpack.c.l.b16 %v146
    %v183 = vunpack.c.l.b16 %v147
    %v184 = vunpack.c.l.b16 %v148
    %v185 = vunpack.c.l.b16 %v149
    %v186 = vunpack.c.l.b16 %v150
    %v187 = vunpack.c.l.b16 %v151
    %v188 = vunpack.c.l.b16 %v152
    %v189 = vunpack.c.l.b16 %v153
    %v190 = vunpack.c.l.b16 %v154
    %v191 = vunpack.c.l.b16 %v155
    %v192 = vunpack.c.l.b16 %v156
    %v193 = vunpack.c.l.b16 %v157
    %v194 = vpack.c.b16 %v179, %v178
    %v195 = vpack.c.b16 %v181, %v180
    %v196 = vpack.c.b16 %v183, %v182
    %v197 = vpack.c.b16 %v185, %v184
    %v198 = vpack.c.b16 %v187, %v186
    %v199 = vpack.c.b16 %v189, %v188
    %v200 = vpack.c.b16 %v191, %v190
    %v201 = vpack.c.b16 %v193, %v192
    %210 = vmatpush.bf16.msra.mxu0 %v201
    %211 = vmatpush.bf16.msra.mxu0 %v200
    %212 = vmatpush.bf16.msra.mxu0 %v199
    %213 = vmatpush.bf16.msra.mxu0 %v198
    %214 = vmatpush.bf16.msra.mxu0 %v197
    %215 = vmatpush.bf16.msra.mxu0 %v196
    %216 = vmatpush.bf16.msra.mxu0 %v195
    %217 = vmatpush.bf16.msra.mxu0 %v194
    %218 = vmatmul.bf16.gmra.mxu0 %v141
    %v219 = vpop.f32.mrf.mxu0
    %v220 = vadd.f32 %v160, %v219
    %v221 = vpop.f32.mrf.mxu0
    %222 = vdwg.mxu0
    %v223 = vmax.f32 %v220, 0.0
    %v224 = vpack.c.bf16 %v223, %v223
    %v225 = vld [vmem:[#allocation8] sm:$0xf]
    %v226 = vld [vmem:[#allocation8 + $0x4] sm:$0xf]
    %v227 = vld [vmem:[#allocation8 + $0x8] sm:$0xf]
    %v228 = vld [vmem:[#allocation8 + $0xc] sm:$0xf]
    %v229 = vld [vmem:[#allocation8 + $0x10] sm:$0xf]
    %v230 = vld [vmem:[#allocation8 + $0x14] sm:$0xf]
    %v231 = vld [vmem:[#allocation8 + $0x18] sm:$0xf]
    %v232 = vld [vmem:[#allocation8 + $0x1c] sm:$0xf]
    %v233 = vld [vmem:[#allocation8 + $0x20] sm:$0xf]
    %v234 = vld [vmem:[#allocation8 + $0x24] sm:$0xf]
    %v235 = vld [vmem:[#allocation8 + $0x28] sm:$0xf]
    %v236 = vld [vmem:[#allocation8 + $0x2c] sm:$0xf]
    %v237 = vld [vmem:[#allocation8 + $0x30] sm:$0xf]
    %v238 = vld [vmem:[#allocation8 + $0x34] sm:$0xf]
    %v239 = vld [vmem:[#allocation8 + $0x38] sm:$0xf]
    %v240 = vld [vmem:[#allocation8 + $0x3c] sm:$0xf]
    %v241 = vld [vmem:[%s6] sm:$0x1]
    %v243 = vperm.slane %v241, 0
    %v261 = vunpack.c.l.b16 %v225
    %v262 = vunpack.c.l.b16 %v226
    %v263 = vunpack.c.l.b16 %v227
    %v264 = vunpack.c.l.b16 %v228
    %v265 = vunpack.c.l.b16 %v229
    %v266 = vunpack.c.l.b16 %v230
    %v267 = vunpack.c.l.b16 %v231
    %v268 = vunpack.c.l.b16 %v232
    %v269 = vunpack.c.l.b16 %v233
    %v270 = vunpack.c.l.b16 %v234
    %v271 = vunpack.c.l.b16 %v235
    %v272 = vunpack.c.l.b16 %v236
    %v273 = vunpack.c.l.b16 %v237
    %v274 = vunpack.c.l.b16 %v238
    %v275 = vunpack.c.l.b16 %v239
    %v276 = vunpack.c.l.b16 %v240
    %v277 = vpack.c.b16 %v262, %v261
    %v278 = vpack.c.b16 %v264, %v263
    %v279 = vpack.c.b16 %v266, %v265
    %v280 = vpack.c.b16 %v268, %v267
    %v281 = vpack.c.b16 %v270, %v269
    %v282 = vpack.c.b16 %v272, %v271
    %v283 = vpack.c.b16 %v274, %v273
    %v284 = vpack.c.b16 %v276, %v275
    %293 = vmatpush.bf16.msra.mxu0 %v284
    %294 = vmatpush.bf16.msra.mxu0 %v283
    %295 = vmatpush.bf16.msra.mxu0 %v282
    %296 = vmatpush.bf16.msra.mxu0 %v281
    %297 = vmatpush.bf16.msra.mxu0 %v280
    %298 = vmatpush.bf16.msra.mxu0 %v279
    %299 = vmatpush.bf16.msra.mxu0 %v278
    %300 = vmatpush.bf16.msra.mxu0 %v277
    %301 = vmatmul.bf16.gmra.mxu0 %v224
    %v302 = vpop.f32.mrf.mxu0
    %v303 = vadd.f32 %v243, %v302
    %v304 = vpop.f32.mrf.mxu0
    %305 = vdwg.mxu0
    %v306 = vmax.f32 %v303, 0.0
    %v307 = vpack.c.bf16 %v306, %v306
    %v308 = vld [vmem:[#allocation10] sm:$0xf]
    %v309 = vld [vmem:[#allocation10 + $0x4] sm:$0xf]
    %v310 = vld [vmem:[#allocation10 + $0x8] sm:$0xf]
    %v311 = vld [vmem:[#allocation10 + $0xc] sm:$0xf]
    %v312 = vld [vmem:[#allocation10 + $0x10] sm:$0xf]
    %v313 = vld [vmem:[#allocation10 + $0x14] sm:$0xf]
    %v314 = vld [vmem:[#allocation10 + $0x18] sm:$0xf]
    %v315 = vld [vmem:[#allocation10 + $0x1c] sm:$0xf]
    %v316 = vld [vmem:[#allocation10 + $0x20] sm:$0xf]
    %v317 = vld [vmem:[#allocation10 + $0x24] sm:$0xf]
    %v318 = vld [vmem:[#allocation10 + $0x28] sm:$0xf]
    %v319 = vld [vmem:[#allocation10 + $0x2c] sm:$0xf]
    %v320 = vld [vmem:[#allocation10 + $0x30] sm:$0xf]
    %v321 = vld [vmem:[#allocation10 + $0x34] sm:$0xf]
    %v322 = vld [vmem:[#allocation10 + $0x38] sm:$0xf]
    %v323 = vld [vmem:[#allocation10 + $0x3c] sm:$0xf]
    %v324 = vld [vmem:[%s8] sm:$0x1]
    %v326 = vperm.slane %v324, 0
    %v344 = vunpack.c.l.b16 %v308
    %v345 = vunpack.c.l.b16 %v309
    %v346 = vunpack.c.l.b16 %v310
    %v347 = vunpack.c.l.b16 %v311
    %v348 = vunpack.c.l.b16 %v312
    %v349 = vunpack.c.l.b16 %v313
    %v350 = vunpack.c.l.b16 %v314
    %v351 = vunpack.c.l.b16 %v315
    %v352 = vunpack.c.l.b16 %v316
    %v353 = vunpack.c.l.b16 %v317
    %v354 = vunpack.c.l.b16 %v318
    %v355 = vunpack.c.l.b16 %v319
    %v356 = vunpack.c.l.b16 %v320
    %v357 = vunpack.c.l.b16 %v321
    %v358 = vunpack.c.l.b16 %v322
    %v359 = vunpack.c.l.b16 %v323
    %v360 = vpack.c.b16 %v345, %v344
    %v361 = vpack.c.b16 %v347, %v346
    %v362 = vpack.c.b16 %v349, %v348
    %v363 = vpack.c.b16 %v351, %v350
    %v364 = vpack.c.b16 %v353, %v352
    %v365 = vpack.c.b16 %v355, %v354
    %v366 = vpack.c.b16 %v357, %v356
    %v367 = vpack.c.b16 %v359, %v358
    %376 = vmatpush.bf16.msra.mxu0 %v367
    %377 = vmatpush.bf16.msra.mxu0 %v366
    %378 = vmatpush.bf16.msra.mxu0 %v365
    %379 = vmatpush.bf16.msra.mxu0 %v364
    %380 = vmatpush.bf16.msra.mxu0 %v363
    %381 = vmatpush.bf16.msra.mxu0 %v362
    %382 = vmatpush.bf16.msra.mxu0 %v361
    %383 = vmatpush.bf16.msra.mxu0 %v360
    %384 = vmatmul.bf16.gmra.mxu0 %v307
    %v385 = vpop.f32.mrf.mxu0
    %v386 = vadd.f32 %v326, %v385
    %v387 = vpop.f32.mrf.mxu0
    %388 = vdwg.mxu0
    %389 = vst [vmem:[#allocation11] sm:$0xff] %v386
    // Predicated region
    $region58: #{tpu_custom_call.1} parent=1 // pred_check
      _
    $region59: #{tpu_custom_call.1} parent=1 // pred_check_branch
      %391 = sbr.rel (0) target = $region61
    $region60: #{tpu_custom_call.1} parent=1 // pred_region
      %393 = vsyncadd [#allocation4], 0
      %s395 = sshll.u32 [#allocation11], 4
      %s396 = int_to_ptr.vmem [resolvable:$true] %s395
      %s397 = sshll.u32 %s9, 4
      %s398 = int_to_ptr.hbm [resolvable:$true] %s397
      %400 = dma.vmem_to_hbm [thread:$0]  %s396, 128, %s398, [#allocation4]
    $region61: #{tpu_custom_call.1} parent=1 // pred_fallthru
      _
    // Predicated region
    $region62: #{tpu_custom_call.1} parent=1 // pred_check
      _
    $region63: #{tpu_custom_call.1} parent=1 // pred_check_branch
      %402 = sbr.rel (0) target = $region65
    $region64: #{tpu_custom_call.1} parent=1 // pred_region
      %404 = dma.done [#allocation4], 128
    $region65: #{tpu_custom_call.1} parent=1 // pred_fallthru
      _
    %405 = vsyncpa [#allocation3], 1
    %406 = vsyncpa [#allocation6], 1
    %407 = vsyncpa [#allocation9], 1
    %408 = vsyncpa [#allocation4], 1

</llo_original>
